<compile_context>
chip_gen: v7x
topology: tpu7x:2x2x1
jax: 0.10.0
libtpu: 0.0.40
codegen_flags: <defaults>
</compile_context>

<pallas_src>
import jax
import jax.numpy as jnp
from jax.experimental import pallas as pl
from jax.experimental.pallas import tpu as pltpu


def _pair(v):
    return (v, v) if isinstance(v, int) else tuple(v)


def _quadruple(v):
    return (v, v, v, v) if isinstance(v, int) else tuple(v)


# Paeth / Devillard "opt_med9" median-of-9 selection network.
# Each pair (i, j) is a compare-exchange: vals[i] <- min, vals[j] <- max.
# After the 19 exchanges, vals[4] holds the median.
_MED9_NET = (
    (1, 2), (4, 5), (7, 8),
    (0, 1), (3, 4), (6, 7),
    (1, 2), (4, 5), (7, 8),
    (0, 3), (5, 8), (4, 7),
    (3, 6), (1, 4), (2, 5),
    (4, 7), (4, 2), (6, 4),
    (4, 2),
)


def _make_median_kernel(kh, kw, sh, sw, oh, ow):
    ksz = kh * kw
    med_idx = (ksz - 1) // 2  # torch.median -> lower median for even counts

    def kernel(x_ref, o_ref):
        # Block layouts: x_ref (1, Hp, Wp, TILE_C), o_ref (1, oh, ow, TILE_C).
        # Channel axis sits on the 128-lane axis -> lane-dense compute/stores.
        xp = x_ref[0]  # (Hp, Wp, TILE_C)

        # Gather the kh*kw shifted views that form each pooling window.
        # Shifts are along the leading (H) and sublane (W) axes; the lane axis
        # (channels) is untouched.
        vals = []
        for di in range(kh):
            for dj in range(kw):
                v = xp[di:di + (oh - 1) * sh + 1:sh,
                       dj:dj + (ow - 1) * sw + 1:sw, :]  # (oh, ow, TILE_C)
                vals.append(v)

        # Keep the network in the input dtype (bf16 stays bf16 on v6e/v7x;
        # f32 inputs stay f32).
        def cx(i, j):
            lo = jnp.minimum(vals[i], vals[j])
            hi = jnp.maximum(vals[i], vals[j])
            vals[i], vals[j] = lo, hi

        if ksz == 9:
            # Median-of-9 selection network: 19 compare-exchanges.
            for i, j in _MED9_NET:
                cx(i, j)
            med = vals[4]
        else:
            # TODO(synk): generate a rank-only selection network for general
            # kh*kw instead of a full odd-even transposition sort.
            for rnd in range(ksz):
                for i in range(rnd % 2, ksz - 1, 2):
                    cx(i, i + 1)
            med = vals[med_idx]

        o_ref[0, :, :, :] = med.astype(o_ref.dtype)

    return kernel


def _choose_tile_c(C, Hp, Wp, oh, ow, ksz, itemsize, budget_bytes=24 << 20):
    """Largest channel tile whose block (double-buffered in/out + window temps)
    fits a conservative VMEM budget (safe under v7x's 32 MiB scoped default)."""
    if C % 128 == 0:
        cands = [c for c in range(C, 0, -128) if C % c == 0]
    else:
        cands = [C]
    for tc in cands:
        in_bytes = 2 * Hp * Wp * tc * itemsize       # double-buffered input block
        out_bytes = 2 * oh * ow * tc * itemsize      # double-buffered output block
        tmp_bytes = ksz * oh * ow * tc * itemsize    # shifted-window temporaries
        if in_bytes + out_bytes + tmp_bytes <= budget_bytes:
            return tc
    # TODO(synk): for very large planes, tile H with a (kh-1)-row halo instead.
    return cands[-1]


def median_pool2d(x, kernel_size=3, stride=1, padding=0, same=False):
    """JAX/Pallas equivalent of MedianPool2d.forward for NCHW input x."""
    kh, kw = _pair(kernel_size)
    sh, sw = _pair(stride)
    N, C, H, W = x.shape

    if same:
        ph = max(kh - sh, 0) if H % sh == 0 else max(kh - H % sh, 0)
        pw = max(kw - sw, 0) if W % sw == 0 else max(kw - W % sw, 0)
        p_l = pw // 2
        p_r = pw - p_l
        p_t = ph // 2
        p_b = ph - p_t
    else:
        p_l, p_r, p_t, p_b = _quadruple(padding)

    if p_l or p_r or p_t or p_b:
        # TODO(synk): fuse the reflect padding into the kernel (border handling
        # on the loaded block) to avoid an extra full HBM pass.
        x = jnp.pad(x, ((0, 0), (0, 0), (p_t, p_b), (p_l, p_r)), mode="reflect")

    Hp = H + p_t + p_b
    Wp = W + p_l + p_r
    oh = (Hp - kh) // sh + 1
    ow = (Wp - kw) // sw + 1
    ksz = kh * kw

    # Channel-last layout so channels ride the 128-lane axis (lane-dense
    # compute and unmasked stores once C >= 128).
    xt = jnp.transpose(x, (0, 2, 3, 1))  # (N, Hp, Wp, C)

    tile_c = _choose_tile_c(C, Hp, Wp, oh, ow, ksz, x.dtype.itemsize)
    kernel = _make_median_kernel(kh, kw, sh, sw, oh, ow)

    out_t = pl.pallas_call(
        kernel,
        out_shape=jax.ShapeDtypeStruct((N, oh, ow, C), x.dtype),
        grid=(N, C // tile_c),
        in_specs=[pl.BlockSpec((1, Hp, Wp, tile_c), lambda n, c: (n, 0, 0, c))],
        out_specs=pl.BlockSpec((1, oh, ow, tile_c), lambda n, c: (n, 0, 0, c)),
        compiler_params=pltpu.CompilerParams(
            dimension_semantics=("parallel", "parallel")
        ),
    )(xt)

    return jnp.transpose(out_t, (0, 3, 1, 2))  # back to NCHW


def _median_pool2d_ref(x, kernel_size=3, stride=1, padding=0, same=False):
    """Pure-JAX reference (unfold + sort) mirroring the PyTorch forward."""
    kh, kw = _pair(kernel_size)
    sh, sw = _pair(stride)
    N, C, H, W = x.shape
    if same:
        ph = max(kh - sh, 0) if H % sh == 0 else max(kh - H % sh, 0)
        pw = max(kw - sw, 0) if W % sw == 0 else max(kw - W % sw, 0)
        p_l = pw // 2
        p_r = pw - p_l
        p_t = ph // 2
        p_b = ph - p_t
    else:
        p_l, p_r, p_t, p_b = _quadruple(padding)
    xp = jnp.pad(x, ((0, 0), (0, 0), (p_t, p_b), (p_l, p_r)), mode="reflect")
    Hp, Wp = xp.shape[2], xp.shape[3]
    oh = (Hp - kh) // sh + 1
    ow = (Wp - kw) // sw + 1
    patches = []
    for di in range(kh):
        for dj in range(kw):
            patches.append(xp[:, :, di:di + (oh - 1) * sh + 1:sh,
                              dj:dj + (ow - 1) * sw + 1:sw])
    stacked = jnp.stack(patches, axis=-1)
    srt = jnp.sort(stacked, axis=-1)
    return srt[..., (kh * kw - 1) // 2]


if __name__ == "__main__":
    key = jax.random.PRNGKey(0)
    x = jax.random.normal(key, (2, 4, 16, 16), dtype=jnp.float32)

    # Default config of the module: kernel_size=3, stride=1, padding=0, same=False.
    out = median_pool2d(x, kernel_size=3, stride=1, padding=0, same=False)
    out = jax.block_until_ready(out)
    ref = _median_pool2d_ref(x, kernel_size=3, stride=1, padding=0, same=False)
    assert out.shape == (2, 4, 14, 14), out.shape
    assert jnp.allclose(out, ref), "mismatch vs reference (padding=0)"

    # 'same' padding path (exercises the reflect pad + full-size output).
    out_s = median_pool2d(x, kernel_size=3, stride=1, padding=0, same=True)
    out_s = jax.block_until_ready(out_s)
    ref_s = _median_pool2d_ref(x, kernel_size=3, stride=1, padding=0, same=True)
    assert out_s.shape == (2, 4, 16, 16), out_s.shape
    assert jnp.allclose(out_s, ref_s), "mismatch vs reference (same=True)"

    print("KERNEL_OK")
</pallas_src>

<mosaic_0001>
module attributes {stable_mosaic.version = 11 : i64} {
  func.func @kernel(%arg0: i32, %arg1: i32, %arg2: memref<1x16x16x4xf32, #tpu.memory_space<vmem>>, %arg3: memref<1x14x14x4xf32, #tpu.memory_space<vmem>>) attributes {dimension_semantics = [#tpu.dimension_semantics<parallel>, #tpu.dimension_semantics<parallel>], iteration_bounds = array<i64: 2, 1>, scalar_prefetch = 0 : i64, scratch_operands = 0 : i64, tpu.core_type = #tpu.core_type<tc>, window_params = [{transform_indices = @transform_0, window_bounds = array<i64: 1, 16, 16, 4>}, {transform_indices = @transform_1, window_bounds = array<i64: 1, 14, 14, 4>}]} {
    %c0 = arith.constant 0 : index
    %c0_0 = arith.constant 0 : index
    %c0_1 = arith.constant 0 : index
    %c0_2 = arith.constant 0 : index
    %0 = vector.load %arg2[%c0, %c0_0, %c0_1, %c0_2] : memref<1x16x16x4xf32, #tpu.memory_space<vmem>>, vector<1x16x16x4xf32>
    %1 = vector.shape_cast %0 : vector<1x16x16x4xf32> to vector<16x16x4xf32>
    %2 = vector.extract_strided_slice %1 {offsets = [0, 0, 0], sizes = [14, 14, 4], strides = [1, 1, 1]} : vector<16x16x4xf32> to vector<14x14x4xf32>
    %3 = vector.extract_strided_slice %1 {offsets = [0, 1, 0], sizes = [14, 14, 4], strides = [1, 1, 1]} : vector<16x16x4xf32> to vector<14x14x4xf32>
    %4 = vector.extract_strided_slice %1 {offsets = [0, 2, 0], sizes = [14, 14, 4], strides = [1, 1, 1]} : vector<16x16x4xf32> to vector<14x14x4xf32>
    %5 = vector.extract_strided_slice %1 {offsets = [1, 0, 0], sizes = [14, 14, 4], strides = [1, 1, 1]} : vector<16x16x4xf32> to vector<14x14x4xf32>
    %6 = vector.extract_strided_slice %1 {offsets = [1, 1, 0], sizes = [14, 14, 4], strides = [1, 1, 1]} : vector<16x16x4xf32> to vector<14x14x4xf32>
    %7 = vector.extract_strided_slice %1 {offsets = [1, 2, 0], sizes = [14, 14, 4], strides = [1, 1, 1]} : vector<16x16x4xf32> to vector<14x14x4xf32>
    %8 = vector.extract_strided_slice %1 {offsets = [2, 0, 0], sizes = [14, 14, 4], strides = [1, 1, 1]} : vector<16x16x4xf32> to vector<14x14x4xf32>
    %9 = vector.extract_strided_slice %1 {offsets = [2, 1, 0], sizes = [14, 14, 4], strides = [1, 1, 1]} : vector<16x16x4xf32> to vector<14x14x4xf32>
    %10 = vector.extract_strided_slice %1 {offsets = [2, 2, 0], sizes = [14, 14, 4], strides = [1, 1, 1]} : vector<16x16x4xf32> to vector<14x14x4xf32>
    %11 = arith.minimumf %3, %4 : vector<14x14x4xf32>
    %12 = arith.maximumf %3, %4 : vector<14x14x4xf32>
    %13 = arith.minimumf %6, %7 : vector<14x14x4xf32>
    %14 = arith.maximumf %6, %7 : vector<14x14x4xf32>
    %15 = arith.minimumf %9, %10 : vector<14x14x4xf32>
    %16 = arith.maximumf %9, %10 : vector<14x14x4xf32>
    %17 = arith.minimumf %2, %11 : vector<14x14x4xf32>
    %18 = arith.maximumf %2, %11 : vector<14x14x4xf32>
    %19 = arith.minimumf %5, %13 : vector<14x14x4xf32>
    %20 = arith.maximumf %5, %13 : vector<14x14x4xf32>
    %21 = arith.minimumf %8, %15 : vector<14x14x4xf32>
    %22 = arith.maximumf %8, %15 : vector<14x14x4xf32>
    %23 = arith.minimumf %18, %12 : vector<14x14x4xf32>
    %24 = arith.maximumf %18, %12 : vector<14x14x4xf32>
    %25 = arith.minimumf %20, %14 : vector<14x14x4xf32>
    %26 = arith.maximumf %20, %14 : vector<14x14x4xf32>
    %27 = arith.minimumf %22, %16 : vector<14x14x4xf32>
    %28 = arith.maximumf %22, %16 : vector<14x14x4xf32>
    %29 = arith.maximumf %17, %19 : vector<14x14x4xf32>
    %30 = arith.minimumf %26, %28 : vector<14x14x4xf32>
    %31 = arith.minimumf %25, %27 : vector<14x14x4xf32>
    %32 = arith.maximumf %25, %27 : vector<14x14x4xf32>
    %33 = arith.maximumf %29, %21 : vector<14x14x4xf32>
    %34 = arith.maximumf %23, %31 : vector<14x14x4xf32>
    %35 = arith.minimumf %24, %30 : vector<14x14x4xf32>
    %36 = arith.minimumf %34, %32 : vector<14x14x4xf32>
    %37 = arith.minimumf %36, %35 : vector<14x14x4xf32>
    %38 = arith.maximumf %36, %35 : vector<14x14x4xf32>
    %39 = arith.maximumf %33, %37 : vector<14x14x4xf32>
    %40 = arith.minimumf %39, %38 : vector<14x14x4xf32>
    %c0_3 = arith.constant 0 : index
    %c0_4 = arith.constant 0 : index
    %c0_5 = arith.constant 0 : index
    %c0_6 = arith.constant 0 : index
    %41 = vector.load %arg3[%c0_3, %c0_4, %c0_5, %c0_6] : memref<1x14x14x4xf32, #tpu.memory_space<vmem>>, vector<1x14x14x4xf32>
    %42 = vector.shape_cast %41 : vector<1x14x14x4xf32> to vector<14x14x4xf32>
    %43 = vector.shape_cast %40 : vector<14x14x4xf32> to vector<1x14x14x4xf32>
    tpu.vector_store %arg3[%c0_3, %c0_4, %c0_5, %c0_6], %43 {strides = array<i32>} : memref<1x14x14x4xf32, #tpu.memory_space<vmem>>, vector<1x14x14x4xf32>,
    return
  }
  func.func @transform_0(%arg0: i32, %arg1: i32) -> (i32, i32, i32, i32) {
    %c0_i32 = arith.constant 0 : i32
    %c0_i32_0 = arith.constant 0 : i32
    %c0_i32_1 = arith.constant 0 : i32
    return %arg0, %c0_i32, %c0_i32_0, %arg1 : i32, i32, i32, i32
  }
  func.func @transform_1(%arg0: i32, %arg1: i32) -> (i32, i32, i32, i32) {
    %c0_i32 = arith.constant 0 : i32
    %c0_i32_0 = arith.constant 0 : i32
    %c0_i32_1 = arith.constant 0 : i32
    return %arg0, %c0_i32, %c0_i32_0, %arg1 : i32, i32, i32, i32
  }
}

</mosaic_0001>

<llo_original>
// kernel: tpu_custom_call.1
$region0: #{tpu_custom_call.1}
  #allocation0 [shape = 'u32[]', space=smem, size = 0x4, offset = 0x4, fixed_abs, tag = 'smem constant byte address 0x4 - core index']
  #allocation1 [shape = 'u32[144,128]{1,0:T(1,128)}', space=vmem, size = 0x12000, scoped, tag = 'internal scratch']
  %s0 = inlined_call_operand.vmem [shape: f32[2,16,16,4], index: 0, kind: input, shape index: {}]
  %s1 = inlined_call_operand.vmem [shape: f32[2,14,14,4], index: 1, kind: output, shape index: {}]
  %s2 = sld [smem:[#allocation0]]
  $region37: #{tpu_custom_call.1} parent=0
    _
  %s4 = ssub.s32 1, %s2
  %s5 = scalar_select 0, %s4, %s2
  loop: start=0, step=1, limit=4
  $region2: #{tpu_custom_call.1} parent=0 // loop_pre_header
    _
  $region3: #{tpu_custom_call.1} parent=0 // loop_header
    %s7 = sphi 0, %s11
    %p8 = scmp.ge.s32.totalorder %s7, 4
    %s14 = sphi 0, %s26
    %s15 = sphi 0, %s22
    %s16 = sphi 0, %s14
    %s17 = sphi 0, %s15
    %s18 = sphi 0, %s16
    %s19 = sphi 0, %s17
    %s31 = sphi 0, %s33
    %s34 = sphi 0, %s31
    %s35 = sphi 0, %s34
    %s51 = sphi 0, %s35
    %s59 = sphi 0, %s61
    %s62 = sphi 0, %s59
    %s63 = sphi 0, %s62
    %s79 = sphi 0, %s63
  $region4: #{tpu_custom_call.1} parent=0 // loop_header_branch
    %10 = sbr.rel (%p8) target = $region8
  $region5: #{tpu_custom_call.1} parent=0 // loop_body
    %s12 = ssub.s32 %s7, 1
    %s13 = ssub.s32 %s7, 2
    %s20 = sadd.s32 1, %s15
    %p21 = scmp.ge.s32.totalorder %s20, 1
    %s22 = scalar_select %p21, 0, %s20
    %s23 = sadd.s32 1, %s14
    %s24 = scalar_select %p21, %s23, %s14
    %p25 = scmp.ge.s32.totalorder %s24, 2
    %s26 = scalar_select %p25, 0, %s24
    %s27 = ssub.s32 %s14, %s26
    %s28 = ssub.s32 %s15, %s22
    %s29 = sor.u32 %s27, %s28
    %p30 = scmp.eq.s32.totalorder %s29, 0
    %s32 = sadd.s32 %s31, 1
    %s33 = scalar_select %p30, %s31, %s32
    %p36 = pneg %p30
    %p37 = scmp.eq.s32.totalorder %s7, 1
    %p38 = por %p36, %p37
    %p39 = scmp.ne.s32.totalorder %s31, %s34
    %p40 = scmp.eq.s32.totalorder %s7, 0
    %p41 = por %p39, %p40
    %p42 = scmp.ne.s32.totalorder %s31, %s34
    %p43 = scmp.eq.s32.totalorder %s12, 1
    %p44 = por %p42, %p43
    %p45 = scmp.ne.s32.totalorder %s34, %s35
    %p46 = scmp.eq.s32.totalorder %s12, 0
    %p47 = por %p45, %p46
    %p48 = scmp.ne.s32.totalorder %s34, %s35
    %p49 = scmp.eq.s32.totalorder %s13, 1
    %p50 = por %p48, %p49
    %p52 = scmp.ne.s32.totalorder %s35, %s51
    %p53 = scmp.eq.s32.totalorder %s13, 0
    %p54 = por %p52, %p53
    %s55 = ssub.s32 %s14, %s26
    %s56 = ssub.s32 %s15, %s22
    %s57 = sor.u32 %s55, %s56
    %p58 = scmp.eq.s32.totalorder %s57, 0
    %s60 = sadd.s32 %s59, 1
    %s61 = scalar_select %p58, %s59, %s60
    %p64 = pneg %p58
    %p65 = scmp.eq.s32.totalorder %s7, 1
    %p66 = por %p64, %p65
    %p67 = scmp.ne.s32.totalorder %s59, %s62
    %p68 = scmp.eq.s32.totalorder %s7, 0
    %p69 = por %p67, %p68
    %p70 = scmp.ne.s32.totalorder %s59, %s62
    %p71 = scmp.eq.s32.totalorder %s12, 1
    %p72 = por %p70, %p71
    %p73 = scmp.ne.s32.totalorder %s62, %s63
    %p74 = scmp.eq.s32.totalorder %s12, 0
    %p75 = por %p73, %p74
    %p76 = scmp.ne.s32.totalorder %s62, %s63
    %p77 = scmp.eq.s32.totalorder %s13, 1
    %p78 = por %p76, %p77
    %p80 = scmp.ne.s32.totalorder %s63, %s79
    %p81 = scmp.eq.s32.totalorder %s13, 0
    %p82 = por %p80, %p81
    %p83 = scmp.le.s32.totalorder 1, %s7
    %p84 = scmp.lt.s32.totalorder %s7, 3
    %p85 = pnand %p83, %p84
    %p86 = pneg %p85
    // Predicated region
    $region9: #{tpu_custom_call.1} parent=5 // pred_check
      _
    $region10: #{tpu_custom_call.1} parent=5 // pred_check_branch
      %88 = sbr.rel (%p85) target = $region12
    $region11: #{tpu_custom_call.1} parent=5 // pred_region
      %s89 = ssub.s32 %s7, 1
    $region12: #{tpu_custom_call.1} parent=5 // pred_fallthru
      _
    %p90 = scmp.lt.s32.totalorder %s7, 2
    // Predicated region
    $region13: #{tpu_custom_call.1} parent=5 // pred_check
      %p91 = pneg %p90
    $region14: #{tpu_custom_call.1} parent=5 // pred_check_branch
      %93 = sbr.rel (%p91) target = $region16
    $region15: #{tpu_custom_call.1} parent=5 // pred_region
      // Predicated region
      $region17: #{tpu_custom_call.1} parent=15 // pred_check
        %p94 = pneg %p41
      $region18: #{tpu_custom_call.1} parent=15 // pred_check_branch
        %96 = sbr.rel (%p94) target = $region20
      $region19: #{tpu_custom_call.1} parent=15 // pred_region
        %p97 = scmp.lt.s32.totalorder %s14, 1
        %s98 = scalar_select %p97, %s14, 1
        %p99 = scmp.lt.s32.totalorder %s15, 0
        %s100 = scalar_select %p99, %s15, 0
        %s101 = smul.addr %s98, 32
        %s102 = sadd.s32 %s100, %s101
        %s103 = smul.addr %s102, 8
        %s104 = scalar_lea.vmem %s0, %s103
      $region20: #{tpu_custom_call.1} parent=15 // pred_fallthru
        _
    $region16: #{tpu_custom_call.1} parent=5 // pred_fallthru
      _
    %p105 = scmp.le.s32.totalorder 1, %s7
    %p106 = scmp.lt.s32.totalorder %s7, 3
    %p107 = pnand %p105, %p106
    %p108 = pneg %p107
    // Predicated region
    $region21: #{tpu_custom_call.1} parent=5 // pred_check
      _
    $region22: #{tpu_custom_call.1} parent=5 // pred_check_branch
      %110 = sbr.rel (%p107) target = $region24
    $region23: #{tpu_custom_call.1} parent=5 // pred_region
      %s111 = ssub.s32 %s7, 1
      %p112 = scmp.lt.s32.totalorder %s16, 1
      %s113 = scalar_select %p112, %s16, 1
      %p114 = scmp.lt.s32.totalorder %s17, 0
      %s115 = scalar_select %p114, %s17, 0
      %s116 = smul.addr %s113, 32
      %s117 = sadd.s32 %s115, %s116
      %s118 = smul.addr %s117, 8
      %s119 = scalar_lea.vmem %s0, %s118
      %p120 = pneg %p47
      %p121 = pneg %p44
      %p122 = pneg %p75
      %p123 = pneg %p72
      %p124 = scmp.lt.s32.totalorder %s16, 1
      %s125 = scalar_select %p124, %s16, 1
      %p126 = scmp.lt.s32.totalorder %s17, 0
      %s127 = scalar_select %p126, %s17, 0
      %s128 = smul.addr %s125, 28
      %s129 = sadd.s32 %s127, %s128
      %s130 = smul.addr %s129, 8
      %s131 = scalar_lea.vmem %s1, %s130
      %p132 = scmp.lt.s32.totalorder %s16, 1
      %s133 = scalar_select %p132, %s16, 1
      %p134 = scmp.lt.s32.totalorder %s17, 0
      %s135 = scalar_select %p134, %s17, 0
      %s136 = smul.addr %s133, 32
      %s137 = sadd.s32 %s135, %s136
      %s138 = smul.addr %s137, 8
      %s139 = scalar_lea.vmem %s0, %s138
      %p140 = scmp.lt.s32.totalorder %s16, 1
      %s141 = scalar_select %p140, %s16, 1
      %p142 = scmp.lt.s32.totalorder %s17, 0
      %s143 = scalar_select %p142, %s17, 0
      %s144 = smul.addr %s141, 28
      %s145 = sadd.s32 %s143, %s144
      %s146 = smul.addr %s145, 8
      %s147 = scalar_lea.vmem %s1, %s146
      %v148 = vld [vmem:[%s139] sm:$0xff]
      %v149 = vld [vmem:[%s139 + $0x8] sm:$0xff]
      %v150 = vld [vmem:[%s139 + $0x10] sm:$0xff]
      %v151 = vld [vmem:[%s139 + $0x18] sm:$0xff]
      %v152 = vld [vmem:[%s139 + $0x20] sm:$0xff]
      %v153 = vld [vmem:[%s139 + $0x28] sm:$0xff]
      %v154 = vld [vmem:[%s139 + $0x30] sm:$0xff]
      %v155 = vld [vmem:[%s139 + $0x38] sm:$0xff]
      %v156 = vld [vmem:[%s139 + $0x40] sm:$0xff]
      %v157 = vld [vmem:[%s139 + $0x48] sm:$0xff]
      %v158 = vld [vmem:[%s139 + $0x50] sm:$0xff]
      %v159 = vld [vmem:[%s139 + $0x58] sm:$0xff]
      %v160 = vld [vmem:[%s139 + $0x60] sm:$0xff]
      %v161 = vld [vmem:[%s139 + $0x68] sm:$0xff]
      %v162 = vld [vmem:[%s139 + $0x70] sm:$0xff]
      %v163 = vld [vmem:[%s139 + $0x78] sm:$0xff]
      %v164 = vld [vmem:[%s139 + $0x80] sm:$0xff]
      %v165 = vld [vmem:[%s139 + $0x88] sm:$0xff]
      %v166 = vld [vmem:[%s139 + $0x90] sm:$0xff]
      %v167 = vld [vmem:[%s139 + $0x98] sm:$0xff]
      %v168 = vld [vmem:[%s139 + $0xa0] sm:$0xff]
      %v169 = vld [vmem:[%s139 + $0xa8] sm:$0xff]
      %v170 = vld [vmem:[%s139 + $0xb0] sm:$0xff]
      %v171 = vld [vmem:[%s139 + $0xb8] sm:$0xff]
      %v172 = vld [vmem:[%s139 + $0xc0] sm:$0xff]
      %v173 = vld [vmem:[%s139 + $0xc8] sm:$0xff]
      %v174 = vld [vmem:[%s139 + $0xd0] sm:$0xff]
      %v175 = vld [vmem:[%s139 + $0xd8] sm:$0xff]
      %v176 = vld [vmem:[%s139 + $0xe0] sm:$0xff]
      %v177 = vld [vmem:[%s139 + $0xe8] sm:$0xff]
      %v178 = vld [vmem:[%s139 + $0xf0] sm:$0xff]
      %v179 = vld [vmem:[%s139 + $0xf8] sm:$0xff]
      %vm208 = vcmask 1046528
      %v209 = vrot.slane %v148, 1
      %v210 = vrot.slane %v149, 1
      %v211 = vsel %vm208, %v209, %v210
      %v212 = vrot.slane %v150, 1
      %v213 = vrot.slane %v151, 1
      %v214 = vsel %vm208, %v212, %v213
      %v215 = vrot.slane %v152, 1
      %v216 = vrot.slane %v153, 1
      %v217 = vsel %vm208, %v215, %v216
      %v218 = vrot.slane %v154, 1
      %v219 = vrot.slane %v155, 1
      %v220 = vsel %vm208, %v218, %v219
      %v221 = vrot.slane %v156, 1
      %v222 = vrot.slane %v157, 1
      %v223 = vsel %vm208, %v221, %v222
      %v224 = vrot.slane %v158, 1
      %v225 = vrot.slane %v159, 1
      %v226 = vsel %vm208, %v224, %v225
      %v227 = vrot.slane %v160, 1
      %v228 = vrot.slane %v161, 1
      %v229 = vsel %vm208, %v227, %v228
      %v230 = vrot.slane %v162, 1
      %v231 = vrot.slane %v163, 1
      %v232 = vsel %vm208, %v230, %v231
      %v233 = vrot.slane %v164, 1
      %v234 = vrot.slane %v165, 1
      %v235 = vsel %vm208, %v233, %v234
      %v236 = vrot.slane %v166, 1
      %v237 = vrot.slane %v167, 1
      %v238 = vsel %vm208, %v236, %v237
      %v239 = vrot.slane %v168, 1
      %v240 = vrot.slane %v169, 1
      %v241 = vsel %vm208, %v239, %v240
      %v242 = vrot.slane %v170, 1
      %v243 = vrot.slane %v171, 1
      %v244 = vsel %vm208, %v242, %v243
      %v245 = vrot.slane %v172, 1
      %v246 = vrot.slane %v173, 1
      %v247 = vsel %vm208, %v245, %v246
      %v248 = vrot.slane %v174, 1
      %v249 = vrot.slane %v175, 1
      %v250 = vsel %vm208, %v248, %v249
      %v279 = vmin.f32 %v148, %v211
      %v280 = vmin.f32 %v149, %v210
      %v281 = vmin.f32 %v150, %v214
      %v282 = vmin.f32 %v151, %v213
      %v283 = vmin.f32 %v152, %v217
      %v284 = vmin.f32 %v153, %v216
      %v285 = vmin.f32 %v154, %v220
      %v286 = vmin.f32 %v155, %v219
      %v287 = vmin.f32 %v156, %v223
      %v288 = vmin.f32 %v157, %v222
      %v289 = vmin.f32 %v158, %v226
      %v290 = vmin.f32 %v159, %v225
      %v291 = vmin.f32 %v160, %v229
      %v292 = vmin.f32 %v161, %v228
      %v293 = vmin.f32 %v162, %v232
      %v294 = vmin.f32 %v163, %v231
      %v295 = vmin.f32 %v164, %v235
      %v296 = vmin.f32 %v165, %v234
      %v297 = vmin.f32 %v166, %v238
      %v298 = vmin.f32 %v167, %v237
      %v299 = vmin.f32 %v168, %v241
      %v300 = vmin.f32 %v169, %v240
      %v301 = vmin.f32 %v170, %v244
      %v302 = vmin.f32 %v171, %v243
      %v303 = vmin.f32 %v172, %v247
      %v304 = vmin.f32 %v173, %v246
      %v305 = vmin.f32 %v174, %v250
      %v306 = vmin.f32 %v175, %v249
      %v307 = vmax.f32 %v148, %v211
      %v308 = vmax.f32 %v149, %v210
      %v309 = vmax.f32 %v150, %v214
      %v310 = vmax.f32 %v151, %v213
      %v311 = vmax.f32 %v152, %v217
      %v312 = vmax.f32 %v153, %v216
      %v313 = vmax.f32 %v154, %v220
      %v314 = vmax.f32 %v155, %v219
      %v315 = vmax.f32 %v156, %v223
      %v316 = vmax.f32 %v157, %v222
      %v317 = vmax.f32 %v158, %v226
      %v318 = vmax.f32 %v159, %v225
      %v319 = vmax.f32 %v160, %v229
      %v320 = vmax.f32 %v161, %v228
      %v321 = vmax.f32 %v162, %v232
      %v322 = vmax.f32 %v163, %v231
      %v323 = vmax.f32 %v164, %v235
      %v324 = vmax.f32 %v165, %v234
      %v325 = vmax.f32 %v166, %v238
      %v326 = vmax.f32 %v167, %v237
      %v327 = vmax.f32 %v168, %v241
      %v328 = vmax.f32 %v169, %v240
      %v329 = vmax.f32 %v170, %v244
      %v330 = vmax.f32 %v171, %v243
      %v331 = vmax.f32 %v172, %v247
      %v332 = vmax.f32 %v173, %v246
      %v333 = vmax.f32 %v174, %v250
      %v334 = vmax.f32 %v175, %v249
      %v337 = vrot.slane %v176, 1
      %v338 = vrot.slane %v177, 1
      %v339 = vsel %vm208, %v337, %v338
      %v342 = vmin.f32 %v176, %v339
      %v343 = vmin.f32 %v177, %v338
      %v344 = vmax.f32 %v176, %v339
      %v345 = vmax.f32 %v177, %v338
      %v348 = vrot.slane %v178, 1
      %v349 = vrot.slane %v179, 1
      %v350 = vsel %vm208, %v348, %v349
      %v353 = vmin.f32 %v178, %v350
      %v354 = vmin.f32 %v179, %v349
      %v355 = vmax.f32 %v178, %v350
      %v356 = vmax.f32 %v179, %v349
      %v385 = vrot.slane %v279, 1
      %v386 = vrot.slane %v280, 1
      %v387 = vsel %vm208, %v385, %v386
      %v388 = vrot.slane %v281, 1
      %v389 = vrot.slane %v282, 1
      %v390 = vsel %vm208, %v388, %v389
      %v391 = vrot.slane %v283, 1
      %v392 = vrot.slane %v284, 1
      %v393 = vsel %vm208, %v391, %v392
      %v394 = vrot.slane %v285, 1
      %v395 = vrot.slane %v286, 1
      %v396 = vsel %vm208, %v394, %v395
      %v397 = vrot.slane %v287, 1
      %v398 = vrot.slane %v288, 1
      %v399 = vsel %vm208, %v397, %v398
      %v400 = vrot.slane %v289, 1
      %v401 = vrot.slane %v290, 1
      %v402 = vsel %vm208, %v400, %v401
      %v403 = vrot.slane %v291, 1
      %v404 = vrot.slane %v292, 1
      %v405 = vsel %vm208, %v403, %v404
      %v406 = vrot.slane %v293, 1
      %v407 = vrot.slane %v294, 1
      %v408 = vsel %vm208, %v406, %v407
      %v409 = vrot.slane %v295, 1
      %v410 = vrot.slane %v296, 1
      %v411 = vsel %vm208, %v409, %v410
      %v412 = vrot.slane %v297, 1
      %v413 = vrot.slane %v298, 1
      %v414 = vsel %vm208, %v412, %v413
      %v415 = vrot.slane %v299, 1
      %v416 = vrot.slane %v300, 1
      %v417 = vsel %vm208, %v415, %v416
      %v418 = vrot.slane %v301, 1
      %v419 = vrot.slane %v302, 1
      %v420 = vsel %vm208, %v418, %v419
      %v421 = vrot.slane %v303, 1
      %v422 = vrot.slane %v304, 1
      %v423 = vsel %vm208, %v421, %v422
      %v424 = vrot.slane %v305, 1
      %v425 = vrot.slane %v306, 1
      %v426 = vsel %vm208, %v424, %v425
      %v455 = vmin.f32 %v148, %v387
      %v456 = vmin.f32 %v149, %v386
      %v457 = vmin.f32 %v150, %v390
      %v458 = vmin.f32 %v151, %v389
      %v459 = vmin.f32 %v152, %v393
      %v460 = vmin.f32 %v153, %v392
      %v461 = vmin.f32 %v154, %v396
      %v462 = vmin.f32 %v155, %v395
      %v463 = vmin.f32 %v156, %v399
      %v464 = vmin.f32 %v157, %v398
      %v465 = vmin.f32 %v158, %v402
      %v466 = vmin.f32 %v159, %v401
      %v467 = vmin.f32 %v160, %v405
      %v468 = vmin.f32 %v161, %v404
      %v469 = vmin.f32 %v162, %v408
      %v470 = vmin.f32 %v163, %v407
      %v471 = vmin.f32 %v164, %v411
      %v472 = vmin.f32 %v165, %v410
      %v473 = vmin.f32 %v166, %v414
      %v474 = vmin.f32 %v167, %v413
      %v475 = vmin.f32 %v168, %v417
      %v476 = vmin.f32 %v169, %v416
      %v477 = vmin.f32 %v170, %v420
      %v478 = vmin.f32 %v171, %v419
      %v479 = vmin.f32 %v172, %v423
      %v480 = vmin.f32 %v173, %v422
      %v481 = vmin.f32 %v174, %v426
      %v482 = vmin.f32 %v175, %v425
      %v483 = vmax.f32 %v148, %v387
      %v484 = vmax.f32 %v149, %v386
      %v485 = vmax.f32 %v150, %v390
      %v486 = vmax.f32 %v151, %v389
      %v487 = vmax.f32 %v152, %v393
      %v488 = vmax.f32 %v153, %v392
      %v489 = vmax.f32 %v154, %v396
      %v490 = vmax.f32 %v155, %v395
      %v491 = vmax.f32 %v156, %v399
      %v492 = vmax.f32 %v157, %v398
      %v493 = vmax.f32 %v158, %v402
      %v494 = vmax.f32 %v159, %v401
      %v495 = vmax.f32 %v160, %v405
      %v496 = vmax.f32 %v161, %v404
      %v497 = vmax.f32 %v162, %v408
      %v498 = vmax.f32 %v163, %v407
      %v499 = vmax.f32 %v164, %v411
      %v500 = vmax.f32 %v165, %v410
      %v501 = vmax.f32 %v166, %v414
      %v502 = vmax.f32 %v167, %v413
      %v503 = vmax.f32 %v168, %v417
      %v504 = vmax.f32 %v169, %v416
      %v505 = vmax.f32 %v170, %v420
      %v506 = vmax.f32 %v171, %v419
      %v507 = vmax.f32 %v172, %v423
      %v508 = vmax.f32 %v173, %v422
      %v509 = vmax.f32 %v174, %v426
      %v510 = vmax.f32 %v175, %v425
      %v513 = vrot.slane %v342, 1
      %v514 = vrot.slane %v343, 1
      %v515 = vsel %vm208, %v513, %v514
      %v518 = vmin.f32 %v176, %v515
      %v519 = vmin.f32 %v177, %v514
      %v520 = vmax.f32 %v176, %v515
      %v521 = vmax.f32 %v177, %v514
      %v524 = vrot.slane %v353, 1
      %v525 = vrot.slane %v354, 1
      %v526 = vsel %vm208, %v524, %v525
      %v529 = vmin.f32 %v178, %v526
      %v530 = vmin.f32 %v179, %v525
      %v531 = vmax.f32 %v178, %v526
      %v532 = vmax.f32 %v179, %v525
      %v561 = vrot.slane %v307, 1
      %v562 = vrot.slane %v308, 1
      %v563 = vsel %vm208, %v561, %v562
      %v564 = vrot.slane %v309, 1
      %v565 = vrot.slane %v310, 1
      %v566 = vsel %vm208, %v564, %v565
      %v567 = vrot.slane %v311, 1
      %v568 = vrot.slane %v312, 1
      %v569 = vsel %vm208, %v567, %v568
      %v570 = vrot.slane %v313, 1
      %v571 = vrot.slane %v314, 1
      %v572 = vsel %vm208, %v570, %v571
      %v573 = vrot.slane %v315, 1
      %v574 = vrot.slane %v316, 1
      %v575 = vsel %vm208, %v573, %v574
      %v576 = vrot.slane %v317, 1
      %v577 = vrot.slane %v318, 1
      %v578 = vsel %vm208, %v576, %v577
      %v579 = vrot.slane %v319, 1
      %v580 = vrot.slane %v320, 1
      %v581 = vsel %vm208, %v579, %v580
      %v582 = vrot.slane %v321, 1
      %v583 = vrot.slane %v322, 1
      %v584 = vsel %vm208, %v582, %v583
      %v585 = vrot.slane %v323, 1
      %v586 = vrot.slane %v324, 1
      %v587 = vsel %vm208, %v585, %v586
      %v588 = vrot.slane %v325, 1
      %v589 = vrot.slane %v326, 1
      %v590 = vsel %vm208, %v588, %v589
      %v591 = vrot.slane %v327, 1
      %v592 = vrot.slane %v328, 1
      %v593 = vsel %vm208, %v591, %v592
      %v594 = vrot.slane %v329, 1
      %v595 = vrot.slane %v330, 1
      %v596 = vsel %vm208, %v594, %v595
      %v597 = vrot.slane %v331, 1
      %v598 = vrot.slane %v332, 1
      %v599 = vsel %vm208, %v597, %v598
      %v600 = vrot.slane %v333, 1
      %v601 = vrot.slane %v334, 1
      %v602 = vsel %vm208, %v600, %v601
      %v631 = vmin.f32 %v483, %v563
      %v632 = vmin.f32 %v484, %v562
      %v633 = vmin.f32 %v485, %v566
      %v634 = vmin.f32 %v486, %v565
      %v635 = vmin.f32 %v487, %v569
      %v636 = vmin.f32 %v488, %v568
      %v637 = vmin.f32 %v489, %v572
      %v638 = vmin.f32 %v490, %v571
      %v639 = vmin.f32 %v491, %v575
      %v640 = vmin.f32 %v492, %v574
      %v641 = vmin.f32 %v493, %v578
      %v642 = vmin.f32 %v494, %v577
      %v643 = vmin.f32 %v495, %v581
      %v644 = vmin.f32 %v496, %v580
      %v645 = vmin.f32 %v497, %v584
      %v646 = vmin.f32 %v498, %v583
      %v647 = vmin.f32 %v499, %v587
      %v648 = vmin.f32 %v500, %v586
      %v649 = vmin.f32 %v501, %v590
      %v650 = vmin.f32 %v502, %v589
      %v651 = vmin.f32 %v503, %v593
      %v652 = vmin.f32 %v504, %v592
      %v653 = vmin.f32 %v505, %v596
      %v654 = vmin.f32 %v506, %v595
      %v655 = vmin.f32 %v507, %v599
      %v656 = vmin.f32 %v508, %v598
      %v657 = vmin.f32 %v509, %v602
      %v658 = vmin.f32 %v510, %v601
      %v659 = vmax.f32 %v483, %v563
      %v660 = vmax.f32 %v484, %v562
      %v661 = vmax.f32 %v485, %v566
      %v662 = vmax.f32 %v486, %v565
      %v663 = vmax.f32 %v487, %v569
      %v664 = vmax.f32 %v488, %v568
      %v665 = vmax.f32 %v489, %v572
      %v666 = vmax.f32 %v490, %v571
      %v667 = vmax.f32 %v491, %v575
      %v668 = vmax.f32 %v492, %v574
      %v669 = vmax.f32 %v493, %v578
      %v670 = vmax.f32 %v494, %v577
      %v671 = vmax.f32 %v495, %v581
      %v672 = vmax.f32 %v496, %v580
      %v673 = vmax.f32 %v497, %v584
      %v674 = vmax.f32 %v498, %v583
      %v675 = vmax.f32 %v499, %v587
      %v676 = vmax.f32 %v500, %v586
      %v677 = vmax.f32 %v501, %v590
      %v678 = vmax.f32 %v502, %v589
      %v679 = vmax.f32 %v503, %v593
      %v680 = vmax.f32 %v504, %v592
      %v681 = vmax.f32 %v505, %v596
      %v682 = vmax.f32 %v506, %v595
      %v683 = vmax.f32 %v507, %v599
      %v684 = vmax.f32 %v508, %v598
      %v685 = vmax.f32 %v509, %v602
      %v686 = vmax.f32 %v510, %v601
      %v689 = vrot.slane %v344, 1
      %v690 = vrot.slane %v345, 1
      %v691 = vsel %vm208, %v689, %v690
      %v694 = vmin.f32 %v520, %v691
      %v695 = vmin.f32 %v521, %v690
      %v696 = vmax.f32 %v520, %v691
      %v697 = vmax.f32 %v521, %v690
      %v700 = vrot.slane %v355, 1
      %v701 = vrot.slane %v356, 1
      %v702 = vsel %vm208, %v700, %v701
      %v705 = vmin.f32 %v531, %v702
      %v706 = vmin.f32 %v532, %v701
      %v707 = vmax.f32 %v531, %v702
      %v708 = vmax.f32 %v532, %v701
      %v709 = vmax.f32 %v455, %v457
      %v710 = vmax.f32 %v456, %v458
      %v711 = vmax.f32 %v457, %v459
      %v712 = vmax.f32 %v458, %v460
      %v713 = vmax.f32 %v459, %v461
      %v714 = vmax.f32 %v460, %v462
      %v715 = vmax.f32 %v461, %v463
      %v716 = vmax.f32 %v462, %v464
      %v717 = vmax.f32 %v463, %v465
      %v718 = vmax.f32 %v464, %v466
      %v719 = vmax.f32 %v465, %v467
      %v720 = vmax.f32 %v466, %v468
      %v721 = vmax.f32 %v467, %v469
      %v722 = vmax.f32 %v468, %v470
      %v723 = vmax.f32 %v469, %v471
      %v724 = vmax.f32 %v470, %v472
      %v725 = vmax.f32 %v471, %v473
      %v726 = vmax.f32 %v472, %v474
      %v727 = vmax.f32 %v473, %v475
      %v728 = vmax.f32 %v474, %v476
      %v729 = vmax.f32 %v475, %v477
      %v730 = vmax.f32 %v476, %v478
      %v731 = vmax.f32 %v477, %v479
      %v732 = vmax.f32 %v478, %v480
      %v733 = vmax.f32 %v479, %v481
      %v734 = vmax.f32 %v480, %v482
      %v735 = vmax.f32 %v481, %v518
      %v736 = vmax.f32 %v482, %v519
      %v737 = vmin.f32 %v661, %v663
      %v738 = vmin.f32 %v662, %v664
      %v739 = vmin.f32 %v663, %v665
      %v740 = vmin.f32 %v664, %v666
      %v741 = vmin.f32 %v665, %v667
      %v742 = vmin.f32 %v666, %v668
      %v743 = vmin.f32 %v667, %v669
      %v744 = vmin.f32 %v668, %v670
      %v745 = vmin.f32 %v669, %v671
      %v746 = vmin.f32 %v670, %v672
      %v747 = vmin.f32 %v671, %v673
      %v748 = vmin.f32 %v672, %v674
      %v749 = vmin.f32 %v673, %v675
      %v750 = vmin.f32 %v674, %v676
      %v751 = vmin.f32 %v675, %v677
      %v752 = vmin.f32 %v676, %v678
      %v753 = vmin.f32 %v677, %v679
      %v754 = vmin.f32 %v678, %v680
      %v755 = vmin.f32 %v679, %v681
      %v756 = vmin.f32 %v680, %v682
      %v757 = vmin.f32 %v681, %v683
      %v758 = vmin.f32 %v682, %v684
      %v759 = vmin.f32 %v683, %v685
      %v760 = vmin.f32 %v684, %v686
      %v761 = vmin.f32 %v685, %v696
      %v762 = vmin.f32 %v686, %v697
      %v763 = vmin.f32 %v696, %v707
      %v764 = vmin.f32 %v697, %v708
      %v765 = vmin.f32 %v633, %v635
      %v766 = vmin.f32 %v634, %v636
      %v767 = vmin.f32 %v635, %v637
      %v768 = vmin.f32 %v636, %v638
      %v769 = vmin.f32 %v637, %v639
      %v770 = vmin.f32 %v638, %v640
      %v771 = vmin.f32 %v639, %v641
      %v772 = vmin.f32 %v640, %v642
      %v773 = vmin.f32 %v641, %v643
      %v774 = vmin.f32 %v642, %v644
      %v775 = vmin.f32 %v643, %v645
      %v776 = vmin.f32 %v644, %v646
      %v777 = vmin.f32 %v645, %v647
      %v778 = vmin.f32 %v646, %v648
      %v779 = vmin.f32 %v647, %v649
      %v780 = vmin.f32 %v648, %v650
      %v781 = vmin.f32 %v649, %v651
      %v782 = vmin.f32 %v650, %v652
      %v783 = vmin.f32 %v651, %v653
      %v784 = vmin.f32 %v652, %v654
      %v785 = vmin.f32 %v653, %v655
      %v786 = vmin.f32 %v654, %v656
      %v787 = vmin.f32 %v655, %v657
      %v788 = vmin.f32 %v656, %v658
      %v789 = vmin.f32 %v657, %v694
      %v790 = vmin.f32 %v658, %v695
      %v791 = vmin.f32 %v694, %v705
      %v792 = vmin.f32 %v695, %v706
      %v793 = vmax.f32 %v633, %v635
      %v794 = vmax.f32 %v634, %v636
      %v795 = vmax.f32 %v635, %v637
      %v796 = vmax.f32 %v636, %v638
      %v797 = vmax.f32 %v637, %v639
      %v798 = vmax.f32 %v638, %v640
      %v799 = vmax.f32 %v639, %v641
      %v800 = vmax.f32 %v640, %v642
      %v801 = vmax.f32 %v641, %v643
      %v802 = vmax.f32 %v642, %v644
      %v803 = vmax.f32 %v643, %v645
      %v804 = vmax.f32 %v644, %v646
      %v805 = vmax.f32 %v645, %v647
      %v806 = vmax.f32 %v646, %v648
      %v807 = vmax.f32 %v647, %v649
      %v808 = vmax.f32 %v648, %v650
      %v809 = vmax.f32 %v649, %v651
      %v810 = vmax.f32 %v650, %v652
      %v811 = vmax.f32 %v651, %v653
      %v812 = vmax.f32 %v652, %v654
      %v813 = vmax.f32 %v653, %v655
      %v814 = vmax.f32 %v654, %v656
      %v815 = vmax.f32 %v655, %v657
      %v816 = vmax.f32 %v656, %v658
      %v817 = vmax.f32 %v657, %v694
      %v818 = vmax.f32 %v658, %v695
      %v819 = vmax.f32 %v694, %v705
      %v820 = vmax.f32 %v695, %v706
      %v821 = vmax.f32 %v709, %v459
      %v822 = vmax.f32 %v710, %v460
      %v823 = vmax.f32 %v711, %v461
      %v824 = vmax.f32 %v712, %v462
      %v825 = vmax.f32 %v713, %v463
      %v826 = vmax.f32 %v714, %v464
      %v827 = vmax.f32 %v715, %v465
      %v828 = vmax.f32 %v716, %v466
      %v829 = vmax.f32 %v717, %v467
      %v830 = vmax.f32 %v718, %v468
      %v831 = vmax.f32 %v719, %v469
      %v832 = vmax.f32 %v720, %v470
      %v833 = vmax.f32 %v721, %v471
      %v834 = vmax.f32 %v722, %v472
      %v835 = vmax.f32 %v723, %v473
      %v836 = vmax.f32 %v724, %v474
      %v837 = vmax.f32 %v725, %v475
      %v838 = vmax.f32 %v726, %v476
      %v839 = vmax.f32 %v727, %v477
      %v840 = vmax.f32 %v728, %v478
      %v841 = vmax.f32 %v729, %v479
      %v842 = vmax.f32 %v730, %v480
      %v843 = vmax.f32 %v731, %v481
      %v844 = vmax.f32 %v732, %v482
      %v845 = vmax.f32 %v733, %v518
      %v846 = vmax.f32 %v734, %v519
      %v847 = vmax.f32 %v735, %v529
      %v848 = vmax.f32 %v736, %v530
      %v849 = vmax.f32 %v631, %v765
      %v850 = vmax.f32 %v632, %v766
      %v851 = vmax.f32 %v633, %v767
      %v852 = vmax.f32 %v634, %v768
      %v853 = vmax.f32 %v635, %v769
      %v854 = vmax.f32 %v636, %v770
      %v855 = vmax.f32 %v637, %v771
      %v856 = vmax.f32 %v638, %v772
      %v857 = vmax.f32 %v639, %v773
      %v858 = vmax.f32 %v640, %v774
      %v859 = vmax.f32 %v641, %v775
      %v860 = vmax.f32 %v642, %v776
      %v861 = vmax.f32 %v643, %v777
      %v862 = vmax.f32 %v644, %v778
      %v863 = vmax.f32 %v645, %v779
      %v864 = vmax.f32 %v646, %v780
      %v865 = vmax.f32 %v647, %v781
      %v866 = vmax.f32 %v648, %v782
      %v867 = vmax.f32 %v649, %v783
      %v868 = vmax.f32 %v650, %v784
      %v869 = vmax.f32 %v651, %v785
      %v870 = vmax.f32 %v652, %v786
      %v871 = vmax.f32 %v653, %v787
      %v872 = vmax.f32 %v654, %v788
      %v873 = vmax.f32 %v655, %v789
      %v874 = vmax.f32 %v656, %v790
      %v875 = vmax.f32 %v657, %v791
      %v876 = vmax.f32 %v658, %v792
      %v877 = vmin.f32 %v659, %v737
      %v878 = vmin.f32 %v660, %v738
      %v879 = vmin.f32 %v661, %v739
      %v880 = vmin.f32 %v662, %v740
      %v881 = vmin.f32 %v663, %v741
      %v882 = vmin.f32 %v664, %v742
      %v883 = vmin.f32 %v665, %v743
      %v884 = vmin.f32 %v666, %v744
      %v885 = vmin.f32 %v667, %v745
      %v886 = vmin.f32 %v668, %v746
      %v887 = vmin.f32 %v669, %v747
      %v888 = vmin.f32 %v670, %v748
      %v889 = vmin.f32 %v671, %v749
      %v890 = vmin.f32 %v672, %v750
      %v891 = vmin.f32 %v673, %v751
      %v892 = vmin.f32 %v674, %v752
      %v893 = vmin.f32 %v675, %v753
      %v894 = vmin.f32 %v676, %v754
      %v895 = vmin.f32 %v677, %v755
      %v896 = vmin.f32 %v678, %v756
      %v897 = vmin.f32 %v679, %v757
      %v898 = vmin.f32 %v680, %v758
      %v899 = vmin.f32 %v681, %v759
      %v900 = vmin.f32 %v682, %v760
      %v901 = vmin.f32 %v683, %v761
      %v902 = vmin.f32 %v684, %v762
      %v903 = vmin.f32 %v685, %v763
      %v904 = vmin.f32 %v686, %v764
      %v905 = vmin.f32 %v849, %v793
      %v906 = vmin.f32 %v850, %v794
      %v907 = vmin.f32 %v851, %v795
      %v908 = vmin.f32 %v852, %v796
      %v909 = vmin.f32 %v853, %v797
      %v910 = vmin.f32 %v854, %v798
      %v911 = vmin.f32 %v855, %v799
      %v912 = vmin.f32 %v856, %v800
      %v913 = vmin.f32 %v857, %v801
      %v914 = vmin.f32 %v858, %v802
      %v915 = vmin.f32 %v859, %v803
      %v916 = vmin.f32 %v860, %v804
      %v917 = vmin.f32 %v861, %v805
      %v918 = vmin.f32 %v862, %v806
      %v919 = vmin.f32 %v863, %v807
      %v920 = vmin.f32 %v864, %v808
      %v921 = vmin.f32 %v865, %v809
      %v922 = vmin.f32 %v866, %v810
      %v923 = vmin.f32 %v867, %v811
      %v924 = vmin.f32 %v868, %v812
      %v925 = vmin.f32 %v869, %v813
      %v926 = vmin.f32 %v870, %v814
      %v927 = vmin.f32 %v871, %v815
      %v928 = vmin.f32 %v872, %v816
      %v929 = vmin.f32 %v873, %v817
      %v930 = vmin.f32 %v874, %v818
      %v931 = vmin.f32 %v875, %v819
      %v932 = vmin.f32 %v876, %v820
      %v933 = vmin.f32 %v905, %v877
      %v934 = vmin.f32 %v906, %v878
      %v935 = vmin.f32 %v907, %v879
      %v936 = vmin.f32 %v908, %v880
      %v937 = vmin.f32 %v909, %v881
      %v938 = vmin.f32 %v910, %v882
      %v939 = vmin.f32 %v911, %v883
      %v940 = vmin.f32 %v912, %v884
      %v941 = vmin.f32 %v913, %v885
      %v942 = vmin.f32 %v914, %v886
      %v943 = vmin.f32 %v915, %v887
      %v944 = vmin.f32 %v916, %v888
      %v945 = vmin.f32 %v917, %v889
      %v946 = vmin.f32 %v918, %v890
      %v947 = vmin.f32 %v919, %v891
      %v948 = vmin.f32 %v920, %v892
      %v949 = vmin.f32 %v921, %v893
      %v950 = vmin.f32 %v922, %v894
      %v951 = vmin.f32 %v923, %v895
      %v952 = vmin.f32 %v924, %v896
      %v953 = vmin.f32 %v925, %v897
      %v954 = vmin.f32 %v926, %v898
      %v955 = vmin.f32 %v927, %v899
      %v956 = vmin.f32 %v928, %v900
      %v957 = vmin.f32 %v929, %v901
      %v958 = vmin.f32 %v930, %v902
      %v959 = vmin.f32 %v931, %v903
      %v960 = vmin.f32 %v932, %v904
      %v961 = vmax.f32 %v905, %v877
      %v962 = vmax.f32 %v906, %v878
      %v963 = vmax.f32 %v907, %v879
      %v964 = vmax.f32 %v908, %v880
      %v965 = vmax.f32 %v909, %v881
      %v966 = vmax.f32 %v910, %v882
      %v967 = vmax.f32 %v911, %v883
      %v968 = vmax.f32 %v912, %v884
      %v969 = vmax.f32 %v913, %v885
      %v970 = vmax.f32 %v914, %v886
      %v971 = vmax.f32 %v915, %v887
      %v972 = vmax.f32 %v916, %v888
      %v973 = vmax.f32 %v917, %v889
      %v974 = vmax.f32 %v918, %v890
      %v975 = vmax.f32 %v919, %v891
      %v976 = vmax.f32 %v920, %v892
      %v977 = vmax.f32 %v921, %v893
      %v978 = vmax.f32 %v922, %v894
      %v979 = vmax.f32 %v923, %v895
      %v980 = vmax.f32 %v924, %v896
      %v981 = vmax.f32 %v925, %v897
      %v982 = vmax.f32 %v926, %v898
      %v983 = vmax.f32 %v927, %v899
      %v984 = vmax.f32 %v928, %v900
      %v985 = vmax.f32 %v929, %v901
      %v986 = vmax.f32 %v930, %v902
      %v987 = vmax.f32 %v931, %v903
      %v988 = vmax.f32 %v932, %v904
      %v989 = vmax.f32 %v821, %v933
      %v990 = vmax.f32 %v822, %v934
      %v991 = vmax.f32 %v823, %v935
      %v992 = vmax.f32 %v824, %v936
      %v993 = vmax.f32 %v825, %v937
      %v994 = vmax.f32 %v826, %v938
      %v995 = vmax.f32 %v827, %v939
      %v996 = vmax.f32 %v828, %v940
      %v997 = vmax.f32 %v829, %v941
      %v998 = vmax.f32 %v830, %v942
      %v999 = vmax.f32 %v831, %v943
      %v1000 = vmax.f32 %v832, %v944
      %v1001 = vmax.f32 %v833, %v945
      %v1002 = vmax.f32 %v834, %v946
      %v1003 = vmax.f32 %v835, %v947
      %v1004 = vmax.f32 %v836, %v948
      %v1005 = vmax.f32 %v837, %v949
      %v1006 = vmax.f32 %v838, %v950
      %v1007 = vmax.f32 %v839, %v951
      %v1008 = vmax.f32 %v840, %v952
      %v1009 = vmax.f32 %v841, %v953
      %v1010 = vmax.f32 %v842, %v954
      %v1011 = vmax.f32 %v843, %v955
      %v1012 = vmax.f32 %v844, %v956
      %v1013 = vmax.f32 %v845, %v957
      %v1014 = vmax.f32 %v846, %v958
      %v1015 = vmax.f32 %v847, %v959
      %v1016 = vmax.f32 %v848, %v960
      %v1017 = vmin.f32 %v989, %v961
      %v1018 = vmin.f32 %v990, %v962
      %v1019 = vmin.f32 %v991, %v963
      %v1020 = vmin.f32 %v992, %v964
      %v1021 = vmin.f32 %v993, %v965
      %v1022 = vmin.f32 %v994, %v966
      %v1023 = vmin.f32 %v995, %v967
      %v1024 = vmin.f32 %v996, %v968
      %v1025 = vmin.f32 %v997, %v969
      %v1026 = vmin.f32 %v998, %v970
      %v1027 = vmin.f32 %v999, %v971
      %v1028 = vmin.f32 %v1000, %v972
      %v1029 = vmin.f32 %v1001, %v973
      %v1030 = vmin.f32 %v1002, %v974
      %v1031 = vmin.f32 %v1003, %v975
      %v1032 = vmin.f32 %v1004, %v976
      %v1033 = vmin.f32 %v1005, %v977
      %v1034 = vmin.f32 %v1006, %v978
      %v1035 = vmin.f32 %v1007, %v979
      %v1036 = vmin.f32 %v1008, %v980
      %v1037 = vmin.f32 %v1009, %v981
      %v1038 = vmin.f32 %v1010, %v982
      %v1039 = vmin.f32 %v1011, %v983
      %v1040 = vmin.f32 %v1012, %v984
      %v1041 = vmin.f32 %v1013, %v985
      %v1042 = vmin.f32 %v1014, %v986
      %v1043 = vmin.f32 %v1015, %v987
      %v1044 = vmin.f32 %v1016, %v988
      %vm1045 = vcmask 31744
      %1046 = vst.msk [vmem:[%s147] sm:$0xff] %vm1045, %v1017
      %vm1047 = vcmask 29696
      %1048 = vst.msk [vmem:[%s147 + $0x8] sm:$0x3f] %vm1047, %v1018
      %1049 = vst.msk [vmem:[%s147 + $0x10] sm:$0xff] %vm1045, %v1019
      %1050 = vst.msk [vmem:[%s147 + $0x18] sm:$0x3f] %vm1047, %v1020
      %1051 = vst.msk [vmem:[%s147 + $0x20] sm:$0xff] %vm1045, %v1021
      %1052 = vst.msk [vmem:[%s147 + $0x28] sm:$0x3f] %vm1047, %v1022
      %1053 = vst.msk [vmem:[%s147 + $0x30] sm:$0xff] %vm1045, %v1023
      %1054 = vst.msk [vmem:[%s147 + $0x38] sm:$0x3f] %vm1047, %v1024
      %1055 = vst.msk [vmem:[%s147 + $0x40] sm:$0xff] %vm1045, %v1025
      %1056 = vst.msk [vmem:[%s147 + $0x48] sm:$0x3f] %vm1047, %v1026
      %1057 = vst.msk [vmem:[%s147 + $0x50] sm:$0xff] %vm1045, %v1027
      %1058 = vst.msk [vmem:[%s147 + $0x58] sm:$0x3f] %vm1047, %v1028
      %1059 = vst.msk [vmem:[%s147 + $0x60] sm:$0xff] %vm1045, %v1029
      %1060 = vst.msk [vmem:[%s147 + $0x68] sm:$0x3f] %vm1047, %v1030
      %1061 = vst.msk [vmem:[%s147 + $0x70] sm:$0xff] %vm1045, %v1031
      %1062 = vst.msk [vmem:[%s147 + $0x78] sm:$0x3f] %vm1047, %v1032
      %1063 = vst.msk [vmem:[%s147 + $0x80] sm:$0xff] %vm1045, %v1033
      %1064 = vst.msk [vmem:[%s147 + $0x88] sm:$0x3f] %vm1047, %v1034
      %1065 = vst.msk [vmem:[%s147 + $0x90] sm:$0xff] %vm1045, %v1035
      %1066 = vst.msk [vmem:[%s147 + $0x98] sm:$0x3f] %vm1047, %v1036
      %1067 = vst.msk [vmem:[%s147 + $0xa0] sm:$0xff] %vm1045, %v1037
      %1068 = vst.msk [vmem:[%s147 + $0xa8] sm:$0x3f] %vm1047, %v1038
      %1069 = vst.msk [vmem:[%s147 + $0xb0] sm:$0xff] %vm1045, %v1039
      %1070 = vst.msk [vmem:[%s147 + $0xb8] sm:$0x3f] %vm1047, %v1040
      %1071 = vst.msk [vmem:[%s147 + $0xc0] sm:$0xff] %vm1045, %v1041
      %1072 = vst.msk [vmem:[%s147 + $0xc8] sm:$0x3f] %vm1047, %v1042
      %1073 = vst.msk [vmem:[%s147 + $0xd0] sm:$0xff] %vm1045, %v1043
      %1074 = vst.msk [vmem:[%s147 + $0xd8] sm:$0x3f] %vm1047, %v1044
      %p1075 = scmp.lt.s32.totalorder %s16, 1
      %s1076 = scalar_select %p1075, %s16, 1
      %p1077 = scmp.lt.s32.totalorder %s17, 0
      %s1078 = scalar_select %p1077, %s17, 0
      %s1079 = smul.addr %s1076, 28
      %s1080 = sadd.s32 %s1078, %s1079
      %s1081 = smul.addr %s1080, 8
      %s1082 = scalar_lea.vmem %s1, %s1081
      // Predicated region
      $region25: #{tpu_custom_call.1} parent=23 // pred_check
        %p1083 = pneg %p72
      $region26: #{tpu_custom_call.1} parent=23 // pred_check_branch
        %1085 = sbr.rel (%p1083) target = $region28
      $region27: #{tpu_custom_call.1} parent=23 // pred_region
        _
      $region28: #{tpu_custom_call.1} parent=23 // pred_fallthru
        _
    $region24: #{tpu_custom_call.1} parent=5 // pred_fallthru
      _
    %p1086 = scmp.le.s32.totalorder 2, %s7
    // Predicated region
    $region29: #{tpu_custom_call.1} parent=5 // pred_check
      %p1087 = pneg %p1086
    $region30: #{tpu_custom_call.1} parent=5 // pred_check_branch
      %1089 = sbr.rel (%p1087) target = $region32
    $region31: #{tpu_custom_call.1} parent=5 // pred_region
      %s1090 = ssub.s32 %s7, 2
      // Predicated region
      $region33: #{tpu_custom_call.1} parent=31 // pred_check
        %p1091 = pneg %p78
      $region34: #{tpu_custom_call.1} parent=31 // pred_check_branch
        %1093 = sbr.rel (%p1091) target = $region36
      $region35: #{tpu_custom_call.1} parent=31 // pred_region
        %p1094 = scmp.lt.s32.totalorder %s18, 1
        %s1095 = scalar_select %p1094, %s18, 1
        %p1096 = scmp.lt.s32.totalorder %s19, 0
        %s1097 = scalar_select %p1096, %s19, 0
        %s1098 = smul.addr %s1095, 28
        %s1099 = sadd.s32 %s1097, %s1098
        %s1100 = smul.addr %s1099, 8
        %s1101 = scalar_lea.vmem %s1, %s1100
      $region36: #{tpu_custom_call.1} parent=31 // pred_fallthru
        _
    $region32: #{tpu_custom_call.1} parent=5 // pred_fallthru
      _
  $region6: #{tpu_custom_call.1} parent=0 // loop_footer
    %s11 = sadd.s32 1, %s7
  $region7: #{tpu_custom_call.1} parent=0 // loop_footer_branch
    %6 = sbr.rel target = $region3
  $region8: #{tpu_custom_call.1} parent=0 // loop_exit
    _

</llo_original>
